<compile_context>
chip_gen: v6e
topology: v6e:2x2x1
jax: 0.10.0
libtpu: 0.0.40
codegen_flags: <defaults>
</compile_context>

<pallas_src>
from functools import partial

import jax
import jax.numpy as jnp
from jax.experimental import pallas as pl
from jax.experimental.pallas import tpu as pltpu


HID1 = 64
HID2 = 32


def _mix32(x):
    """splitmix32-style finalizer on uint32 values (wrapping arithmetic)."""
    x = x ^ (x >> 16)
    x = x * jnp.uint32(0x7FEB352D)
    x = x ^ (x >> 15)
    x = x * jnp.uint32(0x846CA68B)
    x = x ^ (x >> 16)
    return x


def ae_kernel(seed_ref, x_ref, w1_ref, b1_ref, w2_ref, b2_ref,
              w3_ref, b3_ref, w4_ref, b4_ref, o_ref, *,
              drop_rate, training, block_b):
    # Feature-major layout: x_ref is (D, block_b); weights are (out, in),
    # biases (out, 1).  Batch runs along the 128-lane axis.
    xT = x_ref[...].astype(jnp.float32)

    # ---- encoder ----
    h = jnp.dot(w1_ref[...], xT, preferred_element_type=jnp.float32) + b1_ref[...]
    h = jnp.maximum(h, 0.0)
    h = jnp.dot(w2_ref[...], h, preferred_element_type=jnp.float32) + b2_ref[...]
    h = jnp.maximum(h, 0.0)

    # ---- dropout (training-mode nn.Dropout: drop w.p. p, scale 1/(1-p)) ----
    if drop_rate > 0.0 and training:
        rows, cols = h.shape  # (HID2, block_b), static
        row = jax.lax.broadcasted_iota(jnp.int32, (rows, cols), 0).astype(jnp.uint32)
        col = jax.lax.broadcasted_iota(jnp.int32, (rows, cols), 1).astype(jnp.uint32)
        gcol = col + (pl.program_id(0) * block_b).astype(jnp.uint32)
        seed_mix = _mix32(seed_ref[0].astype(jnp.uint32) + jnp.uint32(0x9E3779B9))
        ctr = gcol * jnp.uint32(rows) + row + seed_mix
        bits = _mix32(ctr)
        # integer-domain keep test on the top 31 random bits (signed compare)
        r = (bits >> 1).astype(jnp.int32)
        thresh = min(int(round(drop_rate * (1 << 31))), (1 << 31) - 1)
        keep = r >= jnp.int32(thresh)
        h = jnp.where(keep, h, 0.0) * jnp.float32(1.0 / (1.0 - drop_rate))

    # ---- decoder ----
    h = jnp.dot(w3_ref[...], h, preferred_element_type=jnp.float32) + b3_ref[...]
    h = jnp.maximum(h, 0.0)
    yT = jnp.dot(w4_ref[...], h, preferred_element_type=jnp.float32) + b4_ref[...]

    o_ref[...] = yT.astype(o_ref.dtype)


def init_ae_params(key, input_size):
    """nn.Linear-style init, weights kept in PyTorch (out, in) layout,
    biases as (out, 1) columns for the feature-major kernel."""
    dims = [(input_size, HID1), (HID1, HID2), (HID2, HID1), (HID1, input_size)]
    params = []
    for (fan_in, fan_out) in dims:
        key, kw, kb = jax.random.split(key, 3)
        bound = 1.0 / (fan_in ** 0.5)
        w = jax.random.uniform(kw, (fan_out, fan_in), jnp.float32, -bound, bound)
        b = jax.random.uniform(kb, (fan_out, 1), jnp.float32, -bound, bound)
        params += [w, b]
    return tuple(params)


def _pick_block_b(B, target=2048):
    """Largest batch tile <= target; multiple of 128 when actually tiling."""
    if B <= target:
        return B                       # single grid step, full-extent block
    top = (min(target, B) // 128) * 128
    for cand in range(top, 0, -128):
        if B % cand == 0:
            return cand
    return B                           # no nice divisor -> one big step


def ae_forward(x, params, *, drop_rate=0.5, training=True, seed=0,
               block_b=None):
    B, D = x.shape
    w1, b1, w2, b2, w3, b3, w4, b4 = params
    if block_b is None:
        block_b = _pick_block_b(B)
    assert B % block_b == 0
    n_blocks = B // block_b

    seed_arr = jnp.array([seed], dtype=jnp.int32)
    xT = x.T  # (D, B): lane-dense layout, batch on the 128-lane axis

    def full_block(arr):
        return pl.BlockSpec(arr.shape, lambda i: (0, 0))

    kernel = partial(ae_kernel, drop_rate=float(drop_rate),
                     training=bool(training), block_b=int(block_b))

    flops = 2 * B * (D * HID1 + HID1 * HID2 + HID2 * HID1 + HID1 * D)
    weight_bytes = 4 * (D * HID1 + HID1 + HID1 * HID2 + HID2
                        + HID2 * HID1 + HID1 + HID1 * D + D)
    bytes_accessed = 4 * 2 * B * D + weight_bytes

    yT = pl.pallas_call(
        kernel,
        out_shape=jax.ShapeDtypeStruct((D, B), x.dtype),
        grid=(n_blocks,),
        in_specs=[
            pl.BlockSpec(memory_space=pltpu.MemorySpace.SMEM),   # seed scalar
            pl.BlockSpec((D, block_b), lambda i: (0, i)),        # x^T tile
            full_block(w1), full_block(b1),
            full_block(w2), full_block(b2),
            full_block(w3), full_block(b3),
            full_block(w4), full_block(b4),
        ],
        out_specs=pl.BlockSpec((D, block_b), lambda i: (0, i)),
        compiler_params=pltpu.CompilerParams(
            dimension_semantics=("parallel",)),    # stateless RNG -> safe to shard
        cost_estimate=pl.CostEstimate(
            flops=flops, transcendentals=0, bytes_accessed=bytes_accessed),
    )(seed_arr, xT, w1, b1, w2, b2, w3, b3, w4, b4)

    return yT.T


def ae_forward_ref(x, params):
    """Pure-JAX reference (eval mode; dropout = identity)."""
    w1, b1, w2, b2, w3, b3, w4, b4 = params
    h = jnp.maximum(x @ w1.T + b1[:, 0], 0.0)
    h = jnp.maximum(h @ w2.T + b2[:, 0], 0.0)
    h = jnp.maximum(h @ w3.T + b3[:, 0], 0.0)
    return h @ w4.T + b4[:, 0]


if __name__ == "__main__":
    key = jax.random.PRNGKey(0)
    k_params, k_x = jax.random.split(key)

    input_size = 16
    batch = 16

    params = init_ae_params(k_params, input_size)
    x = jax.random.normal(k_x, (batch, input_size), jnp.float32)

    # 1) eval-mode (dropout = identity): check against pure-JAX reference.
    #    Tolerance is loose enough to cover MXU-vs-XLA f32 matmul precision.
    y_eval = jax.block_until_ready(
        ae_forward(x, params, drop_rate=0.5, training=False, seed=0))
    y_ref = ae_forward_ref(x, params)
    assert y_eval.shape == (batch, input_size)
    assert jnp.allclose(y_eval, y_ref, atol=2e-2, rtol=2e-2), "eval-mode mismatch"

    # 2) training-mode forward (stateless hash dropout, deterministic in seed)
    y_tr1 = jax.block_until_ready(
        ae_forward(x, params, drop_rate=0.5, training=True, seed=1234))
    y_tr2 = jax.block_until_ready(
        ae_forward(x, params, drop_rate=0.5, training=True, seed=1234))
    assert y_tr1.shape == (batch, input_size)
    assert bool(jnp.all(jnp.isfinite(y_tr1)))
    assert bool(jnp.array_equal(y_tr1, y_tr2)), "training mode not deterministic"

    print("KERNEL_OK")
</pallas_src>

<mosaic_0001>
module attributes {stable_mosaic.version = 11 : i64} {
  func.func @ae_kernel(%arg0: i32, %arg1: memref<1xi32, #tpu.memory_space<smem>>, %arg2: memref<16x16xf32, #tpu.memory_space<vmem>>, %arg3: memref<64x16xf32, #tpu.memory_space<vmem>>, %arg4: memref<64x1xf32, #tpu.memory_space<vmem>>, %arg5: memref<32x64xf32, #tpu.memory_space<vmem>>, %arg6: memref<32x1xf32, #tpu.memory_space<vmem>>, %arg7: memref<64x32xf32, #tpu.memory_space<vmem>>, %arg8: memref<64x1xf32, #tpu.memory_space<vmem>>, %arg9: memref<16x64xf32, #tpu.memory_space<vmem>>, %arg10: memref<16x1xf32, #tpu.memory_space<vmem>>, %arg11: memref<16x16xf32, #tpu.memory_space<vmem>>) attributes {dimension_semantics = [#tpu.dimension_semantics<parallel>], iteration_bounds = array<i64: 1>, scalar_prefetch = 0 : i64, scratch_operands = 0 : i64, tpu.core_type = #tpu.core_type<tc>, window_params = [{transform_indices = @transform_0, window_bounds = array<i64: 1>}, {transform_indices = @transform_1, window_bounds = array<i64: 16, 16>}, {pipeline_mode = #tpu.pipeline_mode<synchronous>, transform_indices = @transform_2, window_bounds = array<i64: 64, 16>}, {pipeline_mode = #tpu.pipeline_mode<synchronous>, transform_indices = @transform_3, window_bounds = array<i64: 64, 1>}, {pipeline_mode = #tpu.pipeline_mode<synchronous>, transform_indices = @transform_4, window_bounds = array<i64: 32, 64>}, {pipeline_mode = #tpu.pipeline_mode<synchronous>, transform_indices = @transform_5, window_bounds = array<i64: 32, 1>}, {pipeline_mode = #tpu.pipeline_mode<synchronous>, transform_indices = @transform_6, window_bounds = array<i64: 64, 32>}, {pipeline_mode = #tpu.pipeline_mode<synchronous>, transform_indices = @transform_7, window_bounds = array<i64: 64, 1>}, {pipeline_mode = #tpu.pipeline_mode<synchronous>, transform_indices = @transform_8, window_bounds = array<i64: 16, 64>}, {pipeline_mode = #tpu.pipeline_mode<synchronous>, transform_indices = @transform_9, window_bounds = array<i64: 16, 1>}, {transform_indices = @transform_10, window_bounds = array<i64: 16, 16>}]} {
    %c0 = arith.constant 0 : index
    %c0_0 = arith.constant 0 : index
    %0 = vector.load %arg2[%c0, %c0_0] : memref<16x16xf32, #tpu.memory_space<vmem>>, vector<16x16xf32>
    %c0_1 = arith.constant 0 : index
    %c0_2 = arith.constant 0 : index
    %1 = vector.load %arg3[%c0_1, %c0_2] : memref<64x16xf32, #tpu.memory_space<vmem>>, vector<64x16xf32>
    %cst = arith.constant dense<0.000000e+00> : vector<64x16xf32>
    %2 = tpu.matmul %1, %0, %cst {dimension_numbers = #tpu.dot_dimension_numbers<[1], [0], [0], [1], [0, 0, 1, 1], [], []>} : vector<64x16xf32>, vector<16x16xf32>, vector<64x16xf32> -> vector<64x16xf32>
    %c0_3 = arith.constant 0 : index
    %c0_4 = arith.constant 0 : index
    %3 = vector.load %arg4[%c0_3, %c0_4] : memref<64x1xf32, #tpu.memory_space<vmem>>, vector<64x1xf32>
    %4 = vector.broadcast %3 : vector<64x1xf32> to vector<64x16xf32>
    %5 = arith.addf %2, %4 : vector<64x16xf32>
    %cst_5 = arith.constant 0.000000e+00 : f32
    %6 = vector.broadcast %cst_5 : f32 to vector<64x16xf32>
    %7 = arith.maximumf %5, %6 : vector<64x16xf32>
    %c0_6 = arith.constant 0 : index
    %c0_7 = arith.constant 0 : index
    %8 = vector.load %arg5[%c0_6, %c0_7] : memref<32x64xf32, #tpu.memory_space<vmem>>, vector<32x64xf32>
    %cst_8 = arith.constant dense<0.000000e+00> : vector<32x16xf32>
    %9 = tpu.matmul %8, %7, %cst_8 {dimension_numbers = #tpu.dot_dimension_numbers<[1], [0], [0], [1], [0, 0, 1, 1], [], []>} : vector<32x64xf32>, vector<64x16xf32>, vector<32x16xf32> -> vector<32x16xf32>
    %c0_9 = arith.constant 0 : index
    %c0_10 = arith.constant 0 : index
    %10 = vector.load %arg6[%c0_9, %c0_10] : memref<32x1xf32, #tpu.memory_space<vmem>>, vector<32x1xf32>
    %11 = vector.broadcast %10 : vector<32x1xf32> to vector<32x16xf32>
    %12 = arith.addf %9, %11 : vector<32x16xf32>
    %cst_11 = arith.constant 0.000000e+00 : f32
    %13 = vector.broadcast %cst_11 : f32 to vector<32x16xf32>
    %14 = arith.maximumf %12, %13 : vector<32x16xf32>
    %c0_12 = arith.constant 0 : index
    %c0_13 = arith.constant 0 : index
    %15 = vector.load %arg7[%c0_12, %c0_13] : memref<64x32xf32, #tpu.memory_space<vmem>>, vector<64x32xf32>
    %cst_14 = arith.constant dense<0.000000e+00> : vector<64x16xf32>
    %16 = tpu.matmul %15, %14, %cst_14 {dimension_numbers = #tpu.dot_dimension_numbers<[1], [0], [0], [1], [0, 0, 1, 1], [], []>} : vector<64x32xf32>, vector<32x16xf32>, vector<64x16xf32> -> vector<64x16xf32>
    %c0_15 = arith.constant 0 : index
    %c0_16 = arith.constant 0 : index
    %17 = vector.load %arg8[%c0_15, %c0_16] : memref<64x1xf32, #tpu.memory_space<vmem>>, vector<64x1xf32>
    %18 = vector.broadcast %17 : vector<64x1xf32> to vector<64x16xf32>
    %19 = arith.addf %16, %18 : vector<64x16xf32>
    %cst_17 = arith.constant 0.000000e+00 : f32
    %20 = vector.broadcast %cst_17 : f32 to vector<64x16xf32>
    %21 = arith.maximumf %19, %20 : vector<64x16xf32>
    %c0_18 = arith.constant 0 : index
    %c0_19 = arith.constant 0 : index
    %22 = vector.load %arg9[%c0_18, %c0_19] : memref<16x64xf32, #tpu.memory_space<vmem>>, vector<16x64xf32>
    %cst_20 = arith.constant dense<0.000000e+00> : vector<16x16xf32>
    %23 = tpu.matmul %22, %21, %cst_20 {dimension_numbers = #tpu.dot_dimension_numbers<[1], [0], [0], [1], [0, 0, 1, 1], [], []>} : vector<16x64xf32>, vector<64x16xf32>, vector<16x16xf32> -> vector<16x16xf32>
    %c0_21 = arith.constant 0 : index
    %c0_22 = arith.constant 0 : index
    %24 = vector.load %arg10[%c0_21, %c0_22] : memref<16x1xf32, #tpu.memory_space<vmem>>, vector<16x1xf32>
    %25 = vector.broadcast %24 : vector<16x1xf32> to vector<16x16xf32>
    %26 = arith.addf %23, %25 : vector<16x16xf32>
    %c0_23 = arith.constant 0 : index
    %c0_24 = arith.constant 0 : index
    %27 = vector.load %arg11[%c0_23, %c0_24] : memref<16x16xf32, #tpu.memory_space<vmem>>, vector<16x16xf32>
    tpu.vector_store %arg11[%c0_23, %c0_24], %26 {strides = array<i32>} : memref<16x16xf32, #tpu.memory_space<vmem>>, vector<16x16xf32>,
    return
  }
  func.func @transform_0(%arg0: i32) -> i32 {
    %c0_i32 = arith.constant 0 : i32
    %c0_i32_0 = arith.constant 0 : i32
    return %c0_i32 : i32
  }
  func.func @transform_1(%arg0: i32) -> (i32, i32) {
    %c0_i32 = arith.constant 0 : i32
    %c0_i32_0 = arith.constant 0 : i32
    return %c0_i32, %arg0 : i32, i32
  }
  func.func @transform_2(%arg0: i32) -> (i32, i32) {
    %c0_i32 = arith.constant 0 : i32
    %c0_i32_0 = arith.constant 0 : i32
    %c0_i32_1 = arith.constant 0 : i32
    return %c0_i32, %c0_i32_0 : i32, i32
  }
  func.func @transform_3(%arg0: i32) -> (i32, i32) {
    %c0_i32 = arith.constant 0 : i32
    %c0_i32_0 = arith.constant 0 : i32
    %c0_i32_1 = arith.constant 0 : i32
    return %c0_i32, %c0_i32_0 : i32, i32
  }
  func.func @transform_4(%arg0: i32) -> (i32, i32) {
    %c0_i32 = arith.constant 0 : i32
    %c0_i32_0 = arith.constant 0 : i32
    %c0_i32_1 = arith.constant 0 : i32
    return %c0_i32, %c0_i32_0 : i32, i32
  }
  func.func @transform_5(%arg0: i32) -> (i32, i32) {
    %c0_i32 = arith.constant 0 : i32
    %c0_i32_0 = arith.constant 0 : i32
    %c0_i32_1 = arith.constant 0 : i32
    return %c0_i32, %c0_i32_0 : i32, i32
  }
  func.func @transform_6(%arg0: i32) -> (i32, i32) {
    %c0_i32 = arith.constant 0 : i32
    %c0_i32_0 = arith.constant 0 : i32
    %c0_i32_1 = arith.constant 0 : i32
    return %c0_i32, %c0_i32_0 : i32, i32
  }
  func.func @transform_7(%arg0: i32) -> (i32, i32) {
    %c0_i32 = arith.constant 0 : i32
    %c0_i32_0 = arith.constant 0 : i32
    %c0_i32_1 = arith.constant 0 : i32
    return %c0_i32, %c0_i32_0 : i32, i32
  }
  func.func @transform_8(%arg0: i32) -> (i32, i32) {
    %c0_i32 = arith.constant 0 : i32
    %c0_i32_0 = arith.constant 0 : i32
    %c0_i32_1 = arith.constant 0 : i32
    return %c0_i32, %c0_i32_0 : i32, i32
  }
  func.func @transform_9(%arg0: i32) -> (i32, i32) {
    %c0_i32 = arith.constant 0 : i32
    %c0_i32_0 = arith.constant 0 : i32
    %c0_i32_1 = arith.constant 0 : i32
    return %c0_i32, %c0_i32_0 : i32, i32
  }
  func.func @transform_10(%arg0: i32) -> (i32, i32) {
    %c0_i32 = arith.constant 0 : i32
    %c0_i32_0 = arith.constant 0 : i32
    return %c0_i32, %arg0 : i32, i32
  }
}

</mosaic_0001>

<llo_original>
// kernel: tpu_custom_call.1
$region0: #{tpu_custom_call.1}
  #allocation0 [shape = 'u32[]', space=smem, size = 0x4, offset = 0x4, fixed_abs, tag = 'smem constant byte address 0x4 - core index']
  #allocation1 [shape = 'u32[144,128]{1,0:T(1,128)}', space=vmem, size = 0x12000, scoped, tag = 'internal scratch']
  #allocation2 [shape = 's32[1]{0:T(128)S(6)}', space=smem, size = 0x200, scoped, tag = 'scoped memory for tpu_custom_call.1']
  %s0 = inlined_call_operand.<no memory space> [shape: s32[1], index: 0, kind: input, shape index: {}]
  %s1 = inlined_call_operand.vmem [shape: f32[16,16], index: 1, kind: input, shape index: {}]
  %s2 = inlined_call_operand.vmem [shape: f32[64,16], index: 2, kind: input, shape index: {}]
  %s3 = inlined_call_operand.vmem [shape: f32[64,1], index: 3, kind: input, shape index: {}]
  %s4 = inlined_call_operand.vmem [shape: f32[32,64], index: 4, kind: input, shape index: {}]
  %s5 = inlined_call_operand.vmem [shape: f32[32,1], index: 5, kind: input, shape index: {}]
  %s6 = inlined_call_operand.vmem [shape: f32[64,32], index: 6, kind: input, shape index: {}]
  %s7 = inlined_call_operand.vmem [shape: f32[64,1], index: 7, kind: input, shape index: {}]
  %s8 = inlined_call_operand.vmem [shape: f32[16,64], index: 8, kind: input, shape index: {}]
  %s9 = inlined_call_operand.vmem [shape: f32[16,1], index: 9, kind: input, shape index: {}]
  %s10 = inlined_call_operand.hbm [shape: f32[16,16], index: 10, kind: output, shape index: {}]
  %s11 = sld [smem:[#allocation0]]
  $region50: #{tpu_custom_call.1} parent=0
    _
  %s13 = ssub.s32 1, %s11
  %s14 = scalar_select 0, %s13, %s11
  %15 = sst [smem:[#allocation2]] %s0
  $region1: #{tpu_custom_call.1} parent=0
    #allocation3 [shape = 'u8[8192]{0}', space=vmem, size = 0x2000, scoped, tag = 'output window, operand 0, single buffered']
    #allocation4 [shape = 's32[1]{0}', space=sflag, size = 0x4, scoped, tag = 'scoped memory for tpu_custom_call.1']
    %16 = vsyncpa [#allocation4], 0
    // Predicated region
    $region2: #{tpu_custom_call.1} parent=1 // pred_check
      _
    $region3: #{tpu_custom_call.1} parent=1 // pred_check_branch
      %18 = sbr.rel (0) target = $region5
    $region4: #{tpu_custom_call.1} parent=1 // pred_region
      _
    $region5: #{tpu_custom_call.1} parent=1 // pred_fallthru
      _
    // Predicated region
    $region6: #{tpu_custom_call.1} parent=1 // pred_check
      _
    $region7: #{tpu_custom_call.1} parent=1 // pred_check_branch
      %20 = sbr.rel (0) target = $region9
    $region8: #{tpu_custom_call.1} parent=1 // pred_region
      _
    $region9: #{tpu_custom_call.1} parent=1 // pred_fallthru
      _
    // Predicated region
    $region10: #{tpu_custom_call.1} parent=1 // pred_check
      _
    $region11: #{tpu_custom_call.1} parent=1 // pred_check_branch
      %22 = sbr.rel (0) target = $region13
    $region12: #{tpu_custom_call.1} parent=1 // pred_region
      _
    $region13: #{tpu_custom_call.1} parent=1 // pred_fallthru
      _
    // Predicated region
    $region14: #{tpu_custom_call.1} parent=1 // pred_check
      _
    $region15: #{tpu_custom_call.1} parent=1 // pred_check_branch
      %24 = sbr.rel (0) target = $region17
    $region16: #{tpu_custom_call.1} parent=1 // pred_region
      _
    $region17: #{tpu_custom_call.1} parent=1 // pred_fallthru
      _
    // Predicated region
    $region18: #{tpu_custom_call.1} parent=1 // pred_check
      _
    $region19: #{tpu_custom_call.1} parent=1 // pred_check_branch
      %26 = sbr.rel (0) target = $region21
    $region20: #{tpu_custom_call.1} parent=1 // pred_region
      _
    $region21: #{tpu_custom_call.1} parent=1 // pred_fallthru
      _
    // Predicated region
    $region22: #{tpu_custom_call.1} parent=1 // pred_check
      _
    $region23: #{tpu_custom_call.1} parent=1 // pred_check_branch
      %28 = sbr.rel (0) target = $region25
    $region24: #{tpu_custom_call.1} parent=1 // pred_region
      _
    $region25: #{tpu_custom_call.1} parent=1 // pred_fallthru
      _
    // Predicated region
    $region26: #{tpu_custom_call.1} parent=1 // pred_check
      _
    $region27: #{tpu_custom_call.1} parent=1 // pred_check_branch
      %30 = sbr.rel (0) target = $region29
    $region28: #{tpu_custom_call.1} parent=1 // pred_region
      _
    $region29: #{tpu_custom_call.1} parent=1 // pred_fallthru
      _
    // Predicated region
    $region30: #{tpu_custom_call.1} parent=1 // pred_check
      _
    $region31: #{tpu_custom_call.1} parent=1 // pred_check_branch
      %32 = sbr.rel (0) target = $region33
    $region32: #{tpu_custom_call.1} parent=1 // pred_region
      _
    $region33: #{tpu_custom_call.1} parent=1 // pred_fallthru
      _
    // Predicated region
    $region34: #{tpu_custom_call.1} parent=1 // pred_check
      _
    $region35: #{tpu_custom_call.1} parent=1 // pred_check_branch
      %34 = sbr.rel (0) target = $region37
    $region36: #{tpu_custom_call.1} parent=1 // pred_region
      _
    $region37: #{tpu_custom_call.1} parent=1 // pred_fallthru
      _
    // Predicated region
    $region38: #{tpu_custom_call.1} parent=1 // pred_check
      _
    $region39: #{tpu_custom_call.1} parent=1 // pred_check_branch
      %36 = sbr.rel (0) target = $region41
    $region40: #{tpu_custom_call.1} parent=1 // pred_region
      _
    $region41: #{tpu_custom_call.1} parent=1 // pred_fallthru
      _
    %v37 = vld [vmem:[%s1] sm:$0xff]
    %v38 = vld [vmem:[%s1 + $0x8] sm:$0xff]
    %v39 = vld [vmem:[%s2] sm:$0xff]
    %v40 = vld [vmem:[%s2 + $0x8] sm:$0xff]
    %v41 = vld [vmem:[%s2 + $0x10] sm:$0xff]
    %v42 = vld [vmem:[%s2 + $0x18] sm:$0xff]
    %v43 = vld [vmem:[%s2 + $0x20] sm:$0xff]
    %v44 = vld [vmem:[%s2 + $0x28] sm:$0xff]
    %v45 = vld [vmem:[%s2 + $0x30] sm:$0xff]
    %v46 = vld [vmem:[%s2 + $0x38] sm:$0xff]
    %v47 = vld [vmem:[%s3] sm:$0xff]
    %v48 = vld [vmem:[%s3 + $0x8] sm:$0xff]
    %v49 = vld [vmem:[%s3 + $0x10] sm:$0xff]
    %v50 = vld [vmem:[%s3 + $0x18] sm:$0xff]
    %v51 = vld [vmem:[%s3 + $0x20] sm:$0xff]
    %v52 = vld [vmem:[%s3 + $0x28] sm:$0xff]
    %v53 = vld [vmem:[%s3 + $0x30] sm:$0xff]
    %v54 = vld [vmem:[%s3 + $0x38] sm:$0xff]
    %56 = vset.pattern.permute.xlu0 0
    %57 = vperm.xlu0 %56, %v47
    %v58 = vpop.permute.xlu0 %57
    %61 = vset.pattern.permute.xlu0 0
    %62 = vperm.xlu0 %61, %v48
    %v63 = vpop.permute.xlu0 %62
    %66 = vset.pattern.permute.xlu0 0
    %67 = vperm.xlu0 %66, %v49
    %v68 = vpop.permute.xlu0 %67
    %71 = vset.pattern.permute.xlu0 0
    %72 = vperm.xlu0 %71, %v50
    %v73 = vpop.permute.xlu0 %72
    %76 = vset.pattern.permute.xlu0 0
    %77 = vperm.xlu0 %76, %v51
    %v78 = vpop.permute.xlu0 %77
    %81 = vset.pattern.permute.xlu0 0
    %82 = vperm.xlu0 %81, %v52
    %v83 = vpop.permute.xlu0 %82
    %86 = vset.pattern.permute.xlu0 0
    %87 = vperm.xlu0 %86, %v53
    %v88 = vpop.permute.xlu0 %87
    %91 = vset.pattern.permute.xlu0 0
    %92 = vperm.xlu0 %91, %v54
    %v93 = vpop.permute.xlu0 %92
    %vm95 = vcmask 130048
    %v97 = vsel %vm95, %v39, 0
    %v100 = vsel %vm95, %v40, 0
    %v103 = vsel %vm95, %v41, 0
    %v106 = vsel %vm95, %v42, 0
    %v109 = vsel %vm95, %v43, 0
    %v112 = vsel %vm95, %v44, 0
    %v115 = vsel %vm95, %v45, 0
    %v118 = vsel %vm95, %v46, 0
    %120 = vmatprep.subr.mxu0 0.0
    %121 = vmatpush1.msra.mxu0 0.0
    %122 = vmatprep.subr.mxu0 0.0
    %123 = vmatpush1.msra.mxu0 0.0
    %124 = vmatprep.subr.mxu0 0.0
    %125 = vmatpush1.msra.mxu0 0.0
    %126 = vmatprep.subr.mxu0 0.0
    %127 = vmatpush1.msra.mxu0 0.0
    %128 = vmatprep.subr.mxu0 0.0
    %129 = vmatpush1.msra.mxu0 0.0
    %130 = vmatprep.subr.mxu0 0.0
    %131 = vmatpush1.msra.mxu0 0.0
    %132 = vmatprep.subr.mxu0 0.0
    %133 = vmatpush1.msra.mxu0 0.0
    %134 = vmatprep.subr.mxu0 0.0
    %135 = vmatpush1.msra.mxu0 0.0
    %136 = vmatprep.subr.mxu0 0.0
    %137 = vmatpush1.msra.mxu0 0.0
    %138 = vmatprep.subr.mxu0 0.0
    %139 = vmatpush1.msra.mxu0 0.0
    %140 = vmatprep.subr.mxu0 0.0
    %141 = vmatpush1.msra.mxu0 0.0
    %142 = vmatprep.subr.mxu0 0.0
    %143 = vmatpush1.msra.mxu0 0.0
    %144 = vmatprep.subr.mxu0 0.0
    %145 = vmatpush1.msra.mxu0 0.0
    %146 = vmatprep.subr.mxu0 0.0
    %147 = vmatpush1.msra.mxu0 0.0
    %148 = vmatprep.subr.mxu0 0.0
    %149 = vmatpush1.msra.mxu0 %v38
    %150 = vmatprep.subr.mxu0 0.0
    %151 = vmatpush1.msra.mxu0 %v37
    %152 = vmatprep.subr.mxu0 0.0
    %153 = vmatpush2.msra.mxu0 0.0
    %154 = vmatprep.subr.mxu0 0.0
    %155 = vmatpush2.msra.mxu0 0.0
    %156 = vmatprep.subr.mxu0 0.0
    %157 = vmatpush2.msra.mxu0 0.0
    %158 = vmatprep.subr.mxu0 0.0
    %159 = vmatpush2.msra.mxu0 0.0
    %160 = vmatprep.subr.mxu0 0.0
    %161 = vmatpush2.msra.mxu0 0.0
    %162 = vmatprep.subr.mxu0 0.0
    %163 = vmatpush2.msra.mxu0 0.0
    %164 = vmatprep.subr.mxu0 0.0
    %165 = vmatpush2.msra.mxu0 0.0
    %166 = vmatprep.subr.mxu0 0.0
    %167 = vmatpush2.msra.mxu0 0.0
    %168 = vmatprep.subr.mxu0 0.0
    %169 = vmatpush2.msra.mxu0 0.0
    %170 = vmatprep.subr.mxu0 0.0
    %171 = vmatpush2.msra.mxu0 0.0
    %172 = vmatprep.subr.mxu0 0.0
    %173 = vmatpush2.msra.mxu0 0.0
    %174 = vmatprep.subr.mxu0 0.0
    %175 = vmatpush2.msra.mxu0 0.0
    %176 = vmatprep.subr.mxu0 0.0
    %177 = vmatpush2.msra.mxu0 0.0
    %178 = vmatprep.subr.mxu0 0.0
    %179 = vmatpush2.msra.mxu0 0.0
    %180 = vmatprep.subr.mxu0 0.0
    %181 = vmatpush2.msra.mxu0 0.0
    %182 = vmatprep.subr.mxu0 0.0
    %183 = vmatpush2.msra.mxu0 0.0
    %184 = vmatprep.mubr.f32.mxu0 0.0
    %185 = vmatmul.mubr.f32.gmra.mxu0 %v97
    %v186 = vpop.f32.mrf.mxu0
    %v187 = vadd.f32 %v58, %v186
    %v188 = vpop.f32.mrf.mxu0
    %189 = vmatprep.mubr.f32.mxu0 0.0
    %190 = vmatmul.mubr.f32.gmra.mxu0 %v100
    %v191 = vpop.f32.mrf.mxu0
    %v192 = vadd.f32 %v63, %v191
    %v193 = vpop.f32.mrf.mxu0
    %194 = vmatprep.mubr.f32.mxu0 0.0
    %195 = vmatmul.mubr.f32.gmra.mxu0 %v103
    %v196 = vpop.f32.mrf.mxu0
    %v197 = vadd.f32 %v68, %v196
    %v198 = vpop.f32.mrf.mxu0
    %199 = vmatprep.mubr.f32.mxu0 0.0
    %200 = vmatmul.mubr.f32.gmra.mxu0 %v106
    %v201 = vpop.f32.mrf.mxu0
    %v202 = vadd.f32 %v73, %v201
    %v203 = vpop.f32.mrf.mxu0
    %204 = vmatprep.mubr.f32.mxu0 0.0
    %205 = vmatmul.mubr.f32.gmra.mxu0 %v109
    %v206 = vpop.f32.mrf.mxu0
    %v207 = vadd.f32 %v78, %v206
    %v208 = vpop.f32.mrf.mxu0
    %209 = vmatprep.mubr.f32.mxu0 0.0
    %210 = vmatmul.mubr.f32.gmra.mxu0 %v112
    %v211 = vpop.f32.mrf.mxu0
    %v212 = vadd.f32 %v83, %v211
    %v213 = vpop.f32.mrf.mxu0
    %214 = vmatprep.mubr.f32.mxu0 0.0
    %215 = vmatmul.mubr.f32.gmra.mxu0 %v115
    %v216 = vpop.f32.mrf.mxu0
    %v217 = vadd.f32 %v88, %v216
    %v218 = vpop.f32.mrf.mxu0
    %219 = vmatprep.mubr.f32.mxu0 0.0
    %220 = vmatmul.mubr.f32.gmra.mxu0 %v118
    %v221 = vpop.f32.mrf.mxu0
    %v222 = vadd.f32 %v93, %v221
    %v223 = vpop.f32.mrf.mxu0
    %224 = vdwg.mxu0
    %v225 = vmax.f32 %v187, 0.0
    %v226 = vmax.f32 %v192, 0.0
    %v227 = vmax.f32 %v197, 0.0
    %v228 = vmax.f32 %v202, 0.0
    %v229 = vmax.f32 %v207, 0.0
    %v230 = vmax.f32 %v212, 0.0
    %v231 = vmax.f32 %v217, 0.0
    %v232 = vmax.f32 %v222, 0.0
    %v233 = vld [vmem:[%s4] sm:$0xff]
    %v234 = vld [vmem:[%s4 + $0x8] sm:$0xff]
    %v235 = vld [vmem:[%s4 + $0x10] sm:$0xff]
    %v236 = vld [vmem:[%s4 + $0x18] sm:$0xff]
    %v237 = vld [vmem:[%s5] sm:$0xff]
    %v238 = vld [vmem:[%s5 + $0x8] sm:$0xff]
    %v239 = vld [vmem:[%s5 + $0x10] sm:$0xff]
    %v240 = vld [vmem:[%s5 + $0x18] sm:$0xff]
    %242 = vset.pattern.permute.xlu0 0
    %243 = vperm.xlu0 %242, %v237
    %v244 = vpop.permute.xlu0 %243
    %247 = vset.pattern.permute.xlu0 0
    %248 = vperm.xlu0 %247, %v238
    %v249 = vpop.permute.xlu0 %248
    %252 = vset.pattern.permute.xlu0 0
    %253 = vperm.xlu0 %252, %v239
    %v254 = vpop.permute.xlu0 %253
    %257 = vset.pattern.permute.xlu0 0
    %258 = vperm.xlu0 %257, %v240
    %v259 = vpop.permute.xlu0 %258
    %vm261 = vcmask 523264
    %v263 = vsel %vm261, %v233, 0
    %v266 = vsel %vm261, %v234, 0
    %v269 = vsel %vm261, %v235, 0
    %v272 = vsel %vm261, %v236, 0
    %274 = vmatprep.subr.mxu0 0.0
    %275 = vmatpush1.msra.mxu0 0.0
    %276 = vmatprep.subr.mxu0 0.0
    %277 = vmatpush1.msra.mxu0 0.0
    %278 = vmatprep.subr.mxu0 0.0
    %279 = vmatpush1.msra.mxu0 0.0
    %280 = vmatprep.subr.mxu0 0.0
    %281 = vmatpush1.msra.mxu0 0.0
    %282 = vmatprep.subr.mxu0 0.0
    %283 = vmatpush1.msra.mxu0 0.0
    %284 = vmatprep.subr.mxu0 0.0
    %285 = vmatpush1.msra.mxu0 0.0
    %286 = vmatprep.subr.mxu0 0.0
    %287 = vmatpush1.msra.mxu0 0.0
    %288 = vmatprep.subr.mxu0 0.0
    %289 = vmatpush1.msra.mxu0 0.0
    %290 = vmatprep.subr.mxu0 0.0
    %291 = vmatpush1.msra.mxu0 %v232
    %292 = vmatprep.subr.mxu0 0.0
    %293 = vmatpush1.msra.mxu0 %v231
    %294 = vmatprep.subr.mxu0 0.0
    %295 = vmatpush1.msra.mxu0 %v230
    %296 = vmatprep.subr.mxu0 0.0
    %297 = vmatpush1.msra.mxu0 %v229
    %298 = vmatprep.subr.mxu0 0.0
    %299 = vmatpush1.msra.mxu0 %v228
    %300 = vmatprep.subr.mxu0 0.0
    %301 = vmatpush1.msra.mxu0 %v227
    %302 = vmatprep.subr.mxu0 0.0
    %303 = vmatpush1.msra.mxu0 %v226
    %304 = vmatprep.subr.mxu0 0.0
    %305 = vmatpush1.msra.mxu0 %v225
    %306 = vmatprep.subr.mxu0 0.0
    %307 = vmatpush2.msra.mxu0 0.0
    %308 = vmatprep.subr.mxu0 0.0
    %309 = vmatpush2.msra.mxu0 0.0
    %310 = vmatprep.subr.mxu0 0.0
    %311 = vmatpush2.msra.mxu0 0.0
    %312 = vmatprep.subr.mxu0 0.0
    %313 = vmatpush2.msra.mxu0 0.0
    %314 = vmatprep.subr.mxu0 0.0
    %315 = vmatpush2.msra.mxu0 0.0
    %316 = vmatprep.subr.mxu0 0.0
    %317 = vmatpush2.msra.mxu0 0.0
    %318 = vmatprep.subr.mxu0 0.0
    %319 = vmatpush2.msra.mxu0 0.0
    %320 = vmatprep.subr.mxu0 0.0
    %321 = vmatpush2.msra.mxu0 0.0
    %322 = vmatprep.subr.mxu0 0.0
    %323 = vmatpush2.msra.mxu0 0.0
    %324 = vmatprep.subr.mxu0 0.0
    %325 = vmatpush2.msra.mxu0 0.0
    %326 = vmatprep.subr.mxu0 0.0
    %327 = vmatpush2.msra.mxu0 0.0
    %328 = vmatprep.subr.mxu0 0.0
    %329 = vmatpush2.msra.mxu0 0.0
    %330 = vmatprep.subr.mxu0 0.0
    %331 = vmatpush2.msra.mxu0 0.0
    %332 = vmatprep.subr.mxu0 0.0
    %333 = vmatpush2.msra.mxu0 0.0
    %334 = vmatprep.subr.mxu0 0.0
    %335 = vmatpush2.msra.mxu0 0.0
    %336 = vmatprep.subr.mxu0 0.0
    %337 = vmatpush2.msra.mxu0 0.0
    %338 = vmatprep.mubr.f32.mxu0 0.0
    %339 = vmatmul.mubr.f32.gmra.mxu0 %v263
    %v340 = vpop.f32.mrf.mxu0
    %v341 = vadd.f32 %v244, %v340
    %v342 = vpop.f32.mrf.mxu0
    %343 = vmatprep.mubr.f32.mxu0 0.0
    %344 = vmatmul.mubr.f32.gmra.mxu0 %v266
    %v345 = vpop.f32.mrf.mxu0
    %v346 = vadd.f32 %v249, %v345
    %v347 = vpop.f32.mrf.mxu0
    %348 = vmatprep.mubr.f32.mxu0 0.0
    %349 = vmatmul.mubr.f32.gmra.mxu0 %v269
    %v350 = vpop.f32.mrf.mxu0
    %v351 = vadd.f32 %v254, %v350
    %v352 = vpop.f32.mrf.mxu0
    %353 = vmatprep.mubr.f32.mxu0 0.0
    %354 = vmatmul.mubr.f32.gmra.mxu0 %v272
    %v355 = vpop.f32.mrf.mxu0
    %v356 = vadd.f32 %v259, %v355
    %v357 = vpop.f32.mrf.mxu0
    %358 = vdwg.mxu0
    %v359 = vmax.f32 %v341, 0.0
    %v360 = vmax.f32 %v346, 0.0
    %v361 = vmax.f32 %v351, 0.0
    %v362 = vmax.f32 %v356, 0.0
    %v363 = vld [vmem:[%s6] sm:$0xff]
    %v364 = vld [vmem:[%s6 + $0x8] sm:$0xff]
    %v365 = vld [vmem:[%s6 + $0x10] sm:$0xff]
    %v366 = vld [vmem:[%s6 + $0x18] sm:$0xff]
    %v367 = vld [vmem:[%s6 + $0x20] sm:$0xff]
    %v368 = vld [vmem:[%s6 + $0x28] sm:$0xff]
    %v369 = vld [vmem:[%s6 + $0x30] sm:$0xff]
    %v370 = vld [vmem:[%s6 + $0x38] sm:$0xff]
    %v371 = vld [vmem:[%s7] sm:$0xff]
    %v372 = vld [vmem:[%s7 + $0x8] sm:$0xff]
    %v373 = vld [vmem:[%s7 + $0x10] sm:$0xff]
    %v374 = vld [vmem:[%s7 + $0x18] sm:$0xff]
    %v375 = vld [vmem:[%s7 + $0x20] sm:$0xff]
    %v376 = vld [vmem:[%s7 + $0x28] sm:$0xff]
    %v377 = vld [vmem:[%s7 + $0x30] sm:$0xff]
    %v378 = vld [vmem:[%s7 + $0x38] sm:$0xff]
    %380 = vset.pattern.permute.xlu0 0
    %381 = vperm.xlu0 %380, %v371
    %v382 = vpop.permute.xlu0 %381
    %385 = vset.pattern.permute.xlu0 0
    %386 = vperm.xlu0 %385, %v372
    %v387 = vpop.permute.xlu0 %386
    %390 = vset.pattern.permute.xlu0 0
    %391 = vperm.xlu0 %390, %v373
    %v392 = vpop.permute.xlu0 %391
    %395 = vset.pattern.permute.xlu0 0
    %396 = vperm.xlu0 %395, %v374
    %v397 = vpop.permute.xlu0 %396
    %400 = vset.pattern.permute.xlu0 0
    %401 = vperm.xlu0 %400, %v375
    %v402 = vpop.permute.xlu0 %401
    %405 = vset.pattern.permute.xlu0 0
    %406 = vperm.xlu0 %405, %v376
    %v407 = vpop.permute.xlu0 %406
    %410 = vset.pattern.permute.xlu0 0
    %411 = vperm.xlu0 %410, %v377
    %v412 = vpop.permute.xlu0 %411
    %415 = vset.pattern.permute.xlu0 0
    %416 = vperm.xlu0 %415, %v378
    %v417 = vpop.permute.xlu0 %416
    %vm419 = vcmask 261120
    %v421 = vsel %vm419, %v363, 0
    %v424 = vsel %vm419, %v364, 0
    %v427 = vsel %vm419, %v365, 0
    %v430 = vsel %vm419, %v366, 0
    %v433 = vsel %vm419, %v367, 0
    %v436 = vsel %vm419, %v368, 0
    %v439 = vsel %vm419, %v369, 0
    %v442 = vsel %vm419, %v370, 0
    %444 = vmatprep.subr.mxu0 0.0
    %445 = vmatpush1.msra.mxu0 0.0
    %446 = vmatprep.subr.mxu0 0.0
    %447 = vmatpush1.msra.mxu0 0.0
    %448 = vmatprep.subr.mxu0 0.0
    %449 = vmatpush1.msra.mxu0 0.0
    %450 = vmatprep.subr.mxu0 0.0
    %451 = vmatpush1.msra.mxu0 0.0
    %452 = vmatprep.subr.mxu0 0.0
    %453 = vmatpush1.msra.mxu0 0.0
    %454 = vmatprep.subr.mxu0 0.0
    %455 = vmatpush1.msra.mxu0 0.0
    %456 = vmatprep.subr.mxu0 0.0
    %457 = vmatpush1.msra.mxu0 0.0
    %458 = vmatprep.subr.mxu0 0.0
    %459 = vmatpush1.msra.mxu0 0.0
    %460 = vmatprep.subr.mxu0 0.0
    %461 = vmatpush1.msra.mxu0 0.0
    %462 = vmatprep.subr.mxu0 0.0
    %463 = vmatpush1.msra.mxu0 0.0
    %464 = vmatprep.subr.mxu0 0.0
    %465 = vmatpush1.msra.mxu0 0.0
    %466 = vmatprep.subr.mxu0 0.0
    %467 = vmatpush1.msra.mxu0 0.0
    %468 = vmatprep.subr.mxu0 0.0
    %469 = vmatpush1.msra.mxu0 %v362
    %470 = vmatprep.subr.mxu0 0.0
    %471 = vmatpush1.msra.mxu0 %v361
    %472 = vmatprep.subr.mxu0 0.0
    %473 = vmatpush1.msra.mxu0 %v360
    %474 = vmatprep.subr.mxu0 0.0
    %475 = vmatpush1.msra.mxu0 %v359
    %476 = vmatprep.subr.mxu0 0.0
    %477 = vmatpush2.msra.mxu0 0.0
    %478 = vmatprep.subr.mxu0 0.0
    %479 = vmatpush2.msra.mxu0 0.0
    %480 = vmatprep.subr.mxu0 0.0
    %481 = vmatpush2.msra.mxu0 0.0
    %482 = vmatprep.subr.mxu0 0.0
    %483 = vmatpush2.msra.mxu0 0.0
    %484 = vmatprep.subr.mxu0 0.0
    %485 = vmatpush2.msra.mxu0 0.0
    %486 = vmatprep.subr.mxu0 0.0
    %487 = vmatpush2.msra.mxu0 0.0
    %488 = vmatprep.subr.mxu0 0.0
    %489 = vmatpush2.msra.mxu0 0.0
    %490 = vmatprep.subr.mxu0 0.0
    %491 = vmatpush2.msra.mxu0 0.0
    %492 = vmatprep.subr.mxu0 0.0
    %493 = vmatpush2.msra.mxu0 0.0
    %494 = vmatprep.subr.mxu0 0.0
    %495 = vmatpush2.msra.mxu0 0.0
    %496 = vmatprep.subr.mxu0 0.0
    %497 = vmatpush2.msra.mxu0 0.0
    %498 = vmatprep.subr.mxu0 0.0
    %499 = vmatpush2.msra.mxu0 0.0
    %500 = vmatprep.subr.mxu0 0.0
    %501 = vmatpush2.msra.mxu0 0.0
    %502 = vmatprep.subr.mxu0 0.0
    %503 = vmatpush2.msra.mxu0 0.0
    %504 = vmatprep.subr.mxu0 0.0
    %505 = vmatpush2.msra.mxu0 0.0
    %506 = vmatprep.subr.mxu0 0.0
    %507 = vmatpush2.msra.mxu0 0.0
    %508 = vmatprep.mubr.f32.mxu0 0.0
    %509 = vmatmul.mubr.f32.gmra.mxu0 %v421
    %v510 = vpop.f32.mrf.mxu0
    %v511 = vadd.f32 %v382, %v510
    %v512 = vpop.f32.mrf.mxu0
    %513 = vmatprep.mubr.f32.mxu0 0.0
    %514 = vmatmul.mubr.f32.gmra.mxu0 %v424
    %v515 = vpop.f32.mrf.mxu0
    %v516 = vadd.f32 %v387, %v515
    %v517 = vpop.f32.mrf.mxu0
    %518 = vmatprep.mubr.f32.mxu0 0.0
    %519 = vmatmul.mubr.f32.gmra.mxu0 %v427
    %v520 = vpop.f32.mrf.mxu0
    %v521 = vadd.f32 %v392, %v520
    %v522 = vpop.f32.mrf.mxu0
    %523 = vmatprep.mubr.f32.mxu0 0.0
    %524 = vmatmul.mubr.f32.gmra.mxu0 %v430
    %v525 = vpop.f32.mrf.mxu0
    %v526 = vadd.f32 %v397, %v525
    %v527 = vpop.f32.mrf.mxu0
    %528 = vmatprep.mubr.f32.mxu0 0.0
    %529 = vmatmul.mubr.f32.gmra.mxu0 %v433
    %v530 = vpop.f32.mrf.mxu0
    %v531 = vadd.f32 %v402, %v530
    %v532 = vpop.f32.mrf.mxu0
    %533 = vmatprep.mubr.f32.mxu0 0.0
    %534 = vmatmul.mubr.f32.gmra.mxu0 %v436
    %v535 = vpop.f32.mrf.mxu0
    %v536 = vadd.f32 %v407, %v535
    %v537 = vpop.f32.mrf.mxu0
    %538 = vmatprep.mubr.f32.mxu0 0.0
    %539 = vmatmul.mubr.f32.gmra.mxu0 %v439
    %v540 = vpop.f32.mrf.mxu0
    %v541 = vadd.f32 %v412, %v540
    %v542 = vpop.f32.mrf.mxu0
    %543 = vmatprep.mubr.f32.mxu0 0.0
    %544 = vmatmul.mubr.f32.gmra.mxu0 %v442
    %v545 = vpop.f32.mrf.mxu0
    %v546 = vadd.f32 %v417, %v545
    %v547 = vpop.f32.mrf.mxu0
    %548 = vdwg.mxu0
    %v549 = vmax.f32 %v511, 0.0
    %v550 = vmax.f32 %v516, 0.0
    %v551 = vmax.f32 %v521, 0.0
    %v552 = vmax.f32 %v526, 0.0
    %v553 = vmax.f32 %v531, 0.0
    %v554 = vmax.f32 %v536, 0.0
    %v555 = vmax.f32 %v541, 0.0
    %v556 = vmax.f32 %v546, 0.0
    %v557 = vld [vmem:[%s8] sm:$0xff]
    %v558 = vld [vmem:[%s8 + $0x8] sm:$0xff]
    %v559 = vld [vmem:[%s9] sm:$0xff]
    %v560 = vld [vmem:[%s9 + $0x8] sm:$0xff]
    %562 = vset.pattern.permute.xlu0 0
    %563 = vperm.xlu0 %562, %v559
    %v564 = vpop.permute.xlu0 %563
    %567 = vset.pattern.permute.xlu0 0
    %568 = vperm.xlu0 %567, %v560
    %v569 = vpop.permute.xlu0 %568
    %v572 = vsel %vm261, %v557, 0
    %v575 = vsel %vm261, %v558, 0
    %577 = vmatprep.subr.mxu0 0.0
    %578 = vmatpush1.msra.mxu0 0.0
    %579 = vmatprep.subr.mxu0 0.0
    %580 = vmatpush1.msra.mxu0 0.0
    %581 = vmatprep.subr.mxu0 0.0
    %582 = vmatpush1.msra.mxu0 0.0
    %583 = vmatprep.subr.mxu0 0.0
    %584 = vmatpush1.msra.mxu0 0.0
    %585 = vmatprep.subr.mxu0 0.0
    %586 = vmatpush1.msra.mxu0 0.0
    %587 = vmatprep.subr.mxu0 0.0
    %588 = vmatpush1.msra.mxu0 0.0
    %589 = vmatprep.subr.mxu0 0.0
    %590 = vmatpush1.msra.mxu0 0.0
    %591 = vmatprep.subr.mxu0 0.0
    %592 = vmatpush1.msra.mxu0 0.0
    %593 = vmatprep.subr.mxu0 0.0
    %594 = vmatpush1.msra.mxu0 %v556
    %595 = vmatprep.subr.mxu0 0.0
    %596 = vmatpush1.msra.mxu0 %v555
    %597 = vmatprep.subr.mxu0 0.0
    %598 = vmatpush1.msra.mxu0 %v554
    %599 = vmatprep.subr.mxu0 0.0
    %600 = vmatpush1.msra.mxu0 %v553
    %601 = vmatprep.subr.mxu0 0.0
    %602 = vmatpush1.msra.mxu0 %v552
    %603 = vmatprep.subr.mxu0 0.0
    %604 = vmatpush1.msra.mxu0 %v551
    %605 = vmatprep.subr.mxu0 0.0
    %606 = vmatpush1.msra.mxu0 %v550
    %607 = vmatprep.subr.mxu0 0.0
    %608 = vmatpush1.msra.mxu0 %v549
    %609 = vmatprep.subr.mxu0 0.0
    %610 = vmatpush2.msra.mxu0 0.0
    %611 = vmatprep.subr.mxu0 0.0
    %612 = vmatpush2.msra.mxu0 0.0
    %613 = vmatprep.subr.mxu0 0.0
    %614 = vmatpush2.msra.mxu0 0.0
    %615 = vmatprep.subr.mxu0 0.0
    %616 = vmatpush2.msra.mxu0 0.0
    %617 = vmatprep.subr.mxu0 0.0
    %618 = vmatpush2.msra.mxu0 0.0
    %619 = vmatprep.subr.mxu0 0.0
    %620 = vmatpush2.msra.mxu0 0.0
    %621 = vmatprep.subr.mxu0 0.0
    %622 = vmatpush2.msra.mxu0 0.0
    %623 = vmatprep.subr.mxu0 0.0
    %624 = vmatpush2.msra.mxu0 0.0
    %625 = vmatprep.subr.mxu0 0.0
    %626 = vmatpush2.msra.mxu0 0.0
    %627 = vmatprep.subr.mxu0 0.0
    %628 = vmatpush2.msra.mxu0 0.0
    %629 = vmatprep.subr.mxu0 0.0
    %630 = vmatpush2.msra.mxu0 0.0
    %631 = vmatprep.subr.mxu0 0.0
    %632 = vmatpush2.msra.mxu0 0.0
    %633 = vmatprep.subr.mxu0 0.0
    %634 = vmatpush2.msra.mxu0 0.0
    %635 = vmatprep.subr.mxu0 0.0
    %636 = vmatpush2.msra.mxu0 0.0
    %637 = vmatprep.subr.mxu0 0.0
    %638 = vmatpush2.msra.mxu0 0.0
    %639 = vmatprep.subr.mxu0 0.0
    %640 = vmatpush2.msra.mxu0 0.0
    %641 = vmatprep.mubr.f32.mxu0 0.0
    %642 = vmatmul.mubr.f32.gmra.mxu0 %v572
    %v643 = vpop.f32.mrf.mxu0
    %v644 = vadd.f32 %v564, %v643
    %v645 = vpop.f32.mrf.mxu0
    %646 = vmatprep.mubr.f32.mxu0 0.0
    %647 = vmatmul.mubr.f32.gmra.mxu0 %v575
    %v648 = vpop.f32.mrf.mxu0
    %v649 = vadd.f32 %v569, %v648
    %v650 = vpop.f32.mrf.mxu0
    %651 = vdwg.mxu0
    %652 = vst.msk [vmem:[#allocation3] sm:$0xff] %vm95, %v644
    %653 = vst.msk [vmem:[#allocation3 + $0x8] sm:$0xff] %vm95, %v649
    // Predicated region
    $region42: #{tpu_custom_call.1} parent=1 // pred_check
      _
    $region43: #{tpu_custom_call.1} parent=1 // pred_check_branch
      %655 = sbr.rel (0) target = $region45
    $region44: #{tpu_custom_call.1} parent=1 // pred_region
      %s657 = ssub.s32 256, 256
      %658 = vsyncadd [#allocation4], %s657
      %s659 = sshll.u32 [#allocation3], 4
      %s660 = int_to_ptr.vmem [resolvable:$true] %s659
      %665 = dma.vmem_to_hbm [thread:$0]  %s660, 256, %s10, [#allocation4], 128, 128, 8
    $region45: #{tpu_custom_call.1} parent=1 // pred_fallthru
      _
    // Predicated region
    $region46: #{tpu_custom_call.1} parent=1 // pred_check
      _
    $region47: #{tpu_custom_call.1} parent=1 // pred_check_branch
      %667 = sbr.rel (0) target = $region49
    $region48: #{tpu_custom_call.1} parent=1 // pred_region
      %668 = dma.done [#allocation4], 256
    $region49: #{tpu_custom_call.1} parent=1 // pred_fallthru
      _
    %669 = vsyncpa [#allocation4], 1

</llo_original>
